<compile_context>
chip_gen: v7x
topology: tpu7x:2x2x1
jax: 0.10.0
libtpu: 0.0.40
codegen_flags: <defaults>
</compile_context>

<pallas_src>
import jax
import jax.numpy as jnp
from jax.experimental import pallas as pl
from jax.experimental.pallas import tpu as pltpu

_LANES = 128
_SUBLANE = 16  # bf16 sublane pack; keeps all intermediate tiles aligned


def _round_up(n, m):
    return ((n + m - 1) // m) * m


def policy_net_kernel(x_ref, w1_ref, b1_ref, w2_ref, b2_ref, o_ref):
    n_act = o_ref.shape[-1]

    # fc1 + ReLU: cast x to bf16 in-kernel, f32 MXU accumulation.
    x_bf = x_ref[...].astype(jnp.bfloat16)
    h = jnp.dot(x_bf, w1_ref[...], preferred_element_type=jnp.float32)
    h = jnp.maximum(h + b1_ref[...], 0.0)

    # fc2 on the lane-dense (128-wide) padded action axis.  Padded lanes carry
    # a -1e30 bias, so exp(padded - m) == 0 and they drop out of the softmax
    # sum; only the real `n_act` lanes are stored.
    logits = jnp.dot(h.astype(jnp.bfloat16), w2_ref[...],
                     preferred_element_type=jnp.float32) + b2_ref[...]

    # Softmax over dim=1 (action axis), numerically stable, all f32.
    m = jnp.max(logits, axis=1, keepdims=True)
    e = jnp.exp(logits - m)
    denom = jnp.sum(e, axis=1, keepdims=True)
    # Exact divide (not approx reciprocal) so rows sum to 1 within f32 eps.
    o_ref[...] = (e[:, :n_act] / denom).astype(o_ref.dtype)


def prepare_params(w1, b1, w2, b2):
    """One-time weight preprocessing (hoisted out of the per-call forward)."""
    state_dim, hidden_dim = w1.shape
    hidden_dim2, action_dim = w2.shape
    assert hidden_dim == hidden_dim2
    a_pad = _round_up(action_dim, _LANES)

    w1_bf = w1.astype(jnp.bfloat16)
    b1_f = jnp.reshape(b1, (1, hidden_dim)).astype(jnp.float32)
    # Lane-dense fc2: zero-pad w2 columns; padded bias lanes get -1e30 so the
    # padded logits vanish in the softmax (exp -> 0, excluded from the sum).
    w2_bf = jnp.zeros((hidden_dim, a_pad), jnp.bfloat16)
    w2_bf = w2_bf.at[:, :action_dim].set(w2.astype(jnp.bfloat16))
    b2_f = jnp.full((1, a_pad), -1e30, jnp.float32)
    b2_f = b2_f.at[:, :action_dim].set(
        jnp.reshape(b2, (1, action_dim)).astype(jnp.float32))
    return (w1_bf, b1_f, w2_bf, b2_f, action_dim)


def policy_net_forward(x, params, *, tb_max=8192):
    """x: (B, state_dim) f32; params from prepare_params().
    -> (B, action_dim) float32 probabilities (rows sum to 1)."""
    w1_bf, b1_f, w2_bf, b2_f, action_dim = params
    B, state_dim = x.shape
    hidden_dim = w1_bf.shape[1]
    a_pad = w2_bf.shape[1]
    assert w1_bf.shape[0] == state_dim

    # Balanced batch tiling: split B as evenly as possible into sublane-aligned
    # tiles; force >= 2 programs for non-tiny batches so both v7x TensorCores
    # get work (no-op cost on single-TC v5e/v6e).
    num_tiles = pl.cdiv(B, tb_max)
    if num_tiles == 1 and B >= 2 * _SUBLANE:
        num_tiles = 2
    tb = _round_up(pl.cdiv(B, num_tiles), _SUBLANE)
    grid_len = pl.cdiv(B, tb)
    b_pad = grid_len * tb

    x_f = x.astype(jnp.float32)
    if b_pad != B:
        x_f = jnp.pad(x_f, ((0, b_pad - B), (0, 0)))

    cost = pl.CostEstimate(
        flops=2 * b_pad * (state_dim * hidden_dim + hidden_dim * a_pad),
        transcendentals=b_pad * a_pad,
        bytes_accessed=(x_f.size * 4 + w1_bf.size * 2 + w2_bf.size * 2
                        + b1_f.size * 4 + b2_f.size * 4
                        + b_pad * action_dim * 4),
    )

    out = pl.pallas_call(
        policy_net_kernel,
        out_shape=jax.ShapeDtypeStruct((b_pad, action_dim), jnp.float32),
        grid=(grid_len,),
        in_specs=[
            pl.BlockSpec((tb, state_dim), lambda i: (i, 0)),          # x tiles
            pl.BlockSpec((state_dim, hidden_dim), lambda i: (0, 0)),  # w1 resident
            pl.BlockSpec((1, hidden_dim), lambda i: (0, 0)),          # b1 resident
            pl.BlockSpec((hidden_dim, a_pad), lambda i: (0, 0)),      # w2 resident
            pl.BlockSpec((1, a_pad), lambda i: (0, 0)),               # b2 resident
        ],
        # Unpadded output: last block dim equals the full array dim (legal),
        # writes action_dim*4 bytes/row instead of 512.
        out_specs=pl.BlockSpec((tb, action_dim), lambda i: (i, 0)),
        compiler_params=pltpu.CompilerParams(
            dimension_semantics=("parallel",),
            vmem_limit_bytes=32 * 1024 * 1024),
        cost_estimate=cost,
    )(x_f, w1_bf, b1_f, w2_bf, b2_f)

    if b_pad != B:
        out = out[:B]
    return out


def init_params(key, state_dim, hidden_dim, action_dim):
    """Deterministic PyTorch-Linear-style init (U(-1/sqrt(in), 1/sqrt(in)))."""
    k1, k2, k3, k4 = jax.random.split(key, 4)
    lim1 = 1.0 / (state_dim ** 0.5)
    lim2 = 1.0 / (hidden_dim ** 0.5)
    w1 = jax.random.uniform(k1, (state_dim, hidden_dim), jnp.float32, -lim1, lim1)
    b1 = jax.random.uniform(k2, (1, hidden_dim), jnp.float32, -lim1, lim1)
    w2 = jax.random.uniform(k3, (hidden_dim, action_dim), jnp.float32, -lim2, lim2)
    b2 = jax.random.uniform(k4, (1, action_dim), jnp.float32, -lim2, lim2)
    return w1, b1, w2, b2


def _reference(x, w1, b1, w2, b2):
    """Pure-JAX reference mirroring the kernel's bf16 operand rounding."""
    f32 = jnp.float32
    xb = x.astype(jnp.bfloat16).astype(f32)
    w1b = w1.astype(jnp.bfloat16).astype(f32)
    w2b = w2.astype(jnp.bfloat16).astype(f32)
    h = jnp.maximum(xb @ w1b + jnp.reshape(b1, (1, -1)), 0.0)
    h = h.astype(jnp.bfloat16).astype(f32)
    return jax.nn.softmax(h @ w2b + jnp.reshape(b2, (1, -1)), axis=1)


if __name__ == "__main__":
    # Small shapes consistent with the module: batch=8, state_dim=16,
    # hidden_dim=32, action_dim=4.
    B, state_dim, hidden_dim, action_dim = 8, 16, 32, 4

    key = jax.random.PRNGKey(0)
    kx, kx2, kx3, kp = jax.random.split(key, 4)
    x = jax.random.normal(kx, (B, state_dim), dtype=jnp.float32)
    w1, b1, w2, b2 = init_params(kp, state_dim, hidden_dim, action_dim)
    params = prepare_params(w1, b1, w2, b2)

    out = jax.block_until_ready(policy_net_forward(x, params))
    ref = _reference(x, w1, b1, w2, b2)
    assert out.shape == (B, action_dim)
    assert jnp.allclose(out, ref, atol=2e-3, rtol=2e-3)
    assert jnp.allclose(jnp.sum(out, axis=1), 1.0, atol=1e-4)

    # Batch that is not a tile multiple, with a small tb so the grid has
    # several programs (exercises streaming + pad/slice paths).
    B2 = 100
    x2 = jax.random.normal(kx2, (B2, state_dim), dtype=jnp.float32)
    out2 = jax.block_until_ready(policy_net_forward(x2, params, tb_max=32))
    ref2 = _reference(x2, w1, b1, w2, b2)
    assert out2.shape == (B2, action_dim)
    assert jnp.allclose(out2, ref2, atol=2e-3, rtol=2e-3)
    assert jnp.allclose(jnp.sum(out2, axis=1), 1.0, atol=1e-4)

    # Mid-sized batch with the default tile cap: exercises the forced 2-program
    # split (v7x dual-TensorCore path) and balanced tiling.
    B3 = 300
    x3 = jax.random.normal(kx3, (B3, state_dim), dtype=jnp.float32)
    out3 = jax.block_until_ready(policy_net_forward(x3, params))
    ref3 = _reference(x3, w1, b1, w2, b2)
    assert out3.shape == (B3, action_dim)
    assert jnp.allclose(out3, ref3, atol=2e-3, rtol=2e-3)
    assert jnp.allclose(jnp.sum(out3, axis=1), 1.0, atol=1e-4)

    print("KERNEL_OK")
</pallas_src>

<mosaic_0001>
module attributes {stable_mosaic.version = 11 : i64} {
  func.func @policy_net_kernel(%arg0: i32, %arg1: memref<16x16xf32, #tpu.memory_space<vmem>>, %arg2: memref<16x32xbf16, #tpu.memory_space<vmem>>, %arg3: memref<1x32xf32, #tpu.memory_space<vmem>>, %arg4: memref<32x128xbf16, #tpu.memory_space<vmem>>, %arg5: memref<1x128xf32, #tpu.memory_space<vmem>>, %arg6: memref<16x4xf32, #tpu.memory_space<vmem>>) attributes {dimension_semantics = [#tpu.dimension_semantics<parallel>], iteration_bounds = array<i64: 1>, scalar_prefetch = 0 : i64, scratch_operands = 0 : i64, tpu.core_type = #tpu.core_type<tc>, window_params = [{transform_indices = @transform_0, window_bounds = array<i64: 16, 16>}, {pipeline_mode = #tpu.pipeline_mode<synchronous>, transform_indices = @transform_1, window_bounds = array<i64: 16, 32>}, {pipeline_mode = #tpu.pipeline_mode<synchronous>, transform_indices = @transform_2, window_bounds = array<i64: 1, 32>}, {pipeline_mode = #tpu.pipeline_mode<synchronous>, transform_indices = @transform_3, window_bounds = array<i64: 32, 128>}, {pipeline_mode = #tpu.pipeline_mode<synchronous>, transform_indices = @transform_4, window_bounds = array<i64: 1, 128>}, {transform_indices = @transform_5, window_bounds = array<i64: 16, 4>}]} {
    %c0 = arith.constant 0 : index
    %c0_0 = arith.constant 0 : index
    %0 = vector.load %arg1[%c0, %c0_0] : memref<16x16xf32, #tpu.memory_space<vmem>>, vector<16x16xf32>
    %1 = arith.truncf %0 : vector<16x16xf32> to vector<16x16xbf16>
    %c0_1 = arith.constant 0 : index
    %c0_2 = arith.constant 0 : index
    %2 = vector.load %arg2[%c0_1, %c0_2] : memref<16x32xbf16, #tpu.memory_space<vmem>>, vector<16x32xbf16>
    %cst = arith.constant dense<0.000000e+00> : vector<16x32xf32>
    %3 = tpu.matmul %1, %2, %cst {dimension_numbers = #tpu.dot_dimension_numbers<[1], [0], [0], [1], [0, 0, 1, 1], [], []>} : vector<16x16xbf16>, vector<16x32xbf16>, vector<16x32xf32> -> vector<16x32xf32>
    %c0_3 = arith.constant 0 : index
    %c0_4 = arith.constant 0 : index
    %4 = vector.load %arg3[%c0_3, %c0_4] : memref<1x32xf32, #tpu.memory_space<vmem>>, vector<1x32xf32>
    %5 = vector.broadcast %4 : vector<1x32xf32> to vector<16x32xf32>
    %6 = arith.addf %3, %5 : vector<16x32xf32>
    %cst_5 = arith.constant 0.000000e+00 : f32
    %7 = vector.broadcast %cst_5 : f32 to vector<16x32xf32>
    %8 = arith.maximumf %6, %7 : vector<16x32xf32>
    %9 = arith.truncf %8 : vector<16x32xf32> to vector<16x32xbf16>
    %c0_6 = arith.constant 0 : index
    %c0_7 = arith.constant 0 : index
    %10 = vector.load %arg4[%c0_6, %c0_7] : memref<32x128xbf16, #tpu.memory_space<vmem>>, vector<32x128xbf16>
    %cst_8 = arith.constant dense<0.000000e+00> : vector<16x128xf32>
    %11 = tpu.matmul %9, %10, %cst_8 {dimension_numbers = #tpu.dot_dimension_numbers<[1], [0], [0], [1], [0, 0, 1, 1], [], []>} : vector<16x32xbf16>, vector<32x128xbf16>, vector<16x128xf32> -> vector<16x128xf32>
    %c0_9 = arith.constant 0 : index
    %c0_10 = arith.constant 0 : index
    %12 = vector.load %arg5[%c0_9, %c0_10] : memref<1x128xf32, #tpu.memory_space<vmem>>, vector<1x128xf32>
    %13 = vector.broadcast %12 : vector<1x128xf32> to vector<16x128xf32>
    %14 = arith.addf %11, %13 : vector<16x128xf32>
    %cst_11 = arith.constant dense<0xFF800000> : vector<16xf32>
    %15 = vector.multi_reduction <maximumf>, %14, %cst_11 [1] : vector<16x128xf32> to vector<16xf32>
    %16 = vector.shape_cast %15 : vector<16xf32> to vector<16x1xf32>
    %17 = vector.broadcast %16 : vector<16x1xf32> to vector<16x128xf32>
    %18 = arith.subf %14, %17 : vector<16x128xf32>
    %19 = math.exp %18 : vector<16x128xf32>
    %cst_12 = arith.constant dense<0.000000e+00> : vector<16xf32>
    %20 = vector.multi_reduction <add>, %19, %cst_12 [1] : vector<16x128xf32> to vector<16xf32>
    %21 = vector.shape_cast %20 : vector<16xf32> to vector<16x1xf32>
    %22 = vector.extract_strided_slice %19 {offsets = [0, 0], sizes = [16, 4], strides = [1, 1]} : vector<16x128xf32> to vector<16x4xf32>
    %23 = vector.broadcast %21 : vector<16x1xf32> to vector<16x4xf32>
    %24 = arith.divf %22, %23 : vector<16x4xf32>
    %c0_13 = arith.constant 0 : index
    %c0_14 = arith.constant 0 : index
    %25 = vector.load %arg6[%c0_13, %c0_14] : memref<16x4xf32, #tpu.memory_space<vmem>>, vector<16x4xf32>
    tpu.vector_store %arg6[%c0_13, %c0_14], %24 {strides = array<i32>} : memref<16x4xf32, #tpu.memory_space<vmem>>, vector<16x4xf32>,
    return
  }
  func.func @transform_0(%arg0: i32) -> (i32, i32) {
    %c0_i32 = arith.constant 0 : i32
    %c0_i32_0 = arith.constant 0 : i32
    return %arg0, %c0_i32 : i32, i32
  }
  func.func @transform_1(%arg0: i32) -> (i32, i32) {
    %c0_i32 = arith.constant 0 : i32
    %c0_i32_0 = arith.constant 0 : i32
    %c0_i32_1 = arith.constant 0 : i32
    return %c0_i32, %c0_i32_0 : i32, i32
  }
  func.func @transform_2(%arg0: i32) -> (i32, i32) {
    %c0_i32 = arith.constant 0 : i32
    %c0_i32_0 = arith.constant 0 : i32
    %c0_i32_1 = arith.constant 0 : i32
    return %c0_i32, %c0_i32_0 : i32, i32
  }
  func.func @transform_3(%arg0: i32) -> (i32, i32) {
    %c0_i32 = arith.constant 0 : i32
    %c0_i32_0 = arith.constant 0 : i32
    %c0_i32_1 = arith.constant 0 : i32
    return %c0_i32, %c0_i32_0 : i32, i32
  }
  func.func @transform_4(%arg0: i32) -> (i32, i32) {
    %c0_i32 = arith.constant 0 : i32
    %c0_i32_0 = arith.constant 0 : i32
    %c0_i32_1 = arith.constant 0 : i32
    return %c0_i32, %c0_i32_0 : i32, i32
  }
  func.func @transform_5(%arg0: i32) -> (i32, i32) {
    %c0_i32 = arith.constant 0 : i32
    %c0_i32_0 = arith.constant 0 : i32
    return %arg0, %c0_i32 : i32, i32
  }
}

</mosaic_0001>

<llo_original>
// kernel: tpu_custom_call.1
$region0: #{tpu_custom_call.1}
  #allocation0 [shape = 'u32[]', space=smem, size = 0x4, offset = 0x4, fixed_abs, tag = 'smem constant byte address 0x4 - core index']
  #allocation1 [shape = 'u32[144,128]{1,0:T(1,128)}', space=vmem, size = 0x12000, scoped, tag = 'internal scratch']
  %s0 = inlined_call_operand.hbm [shape: f32[16,16], index: 0, kind: input, shape index: {}]
  %s1 = inlined_call_operand.hbm [shape: bf16[16,32], index: 1, kind: input, shape index: {}]
  %s2 = inlined_call_operand.vmem [shape: f32[1,32], index: 2, kind: input, shape index: {}]
  %s3 = inlined_call_operand.hbm [shape: bf16[32,128], index: 3, kind: input, shape index: {}]
  %s4 = inlined_call_operand.vmem [shape: f32[1,128], index: 4, kind: input, shape index: {}]
  %s5 = inlined_call_operand.vmem [shape: f32[16,4], index: 5, kind: output, shape index: {}]
  %s6 = sld [smem:[#allocation0]]
  $region42: #{tpu_custom_call.1} parent=0
    _
  %s8 = ssub.s32 1, %s6
  %s9 = scalar_select 0, %s8, %s6
  $region1: #{tpu_custom_call.1} parent=0
    #allocation2 [shape = 'u8[8192]{0}', space=vmem, size = 0x2000, scoped, tag = 'input window, operand 0, single buffered']
    #allocation3 [shape = 's32[1]{0}', space=sflag, size = 0x4, scoped, tag = 'scoped memory for tpu_custom_call.1']
    #allocation4 [shape = 'u8[4096]{0}', space=vmem, size = 0x1000, scoped, tag = 'input window, operand 1, single buffered']
    #allocation5 [shape = 's32[1]{0}', space=sflag, size = 0x4, scoped, tag = 'scoped memory for tpu_custom_call.1']
    #allocation6 [shape = 'u8[8192]{0}', space=vmem, size = 0x2000, scoped, tag = 'input window, operand 3, single buffered']
    %10 = vsyncpa [#allocation3], 0
    %11 = vsyncpa [#allocation5], 0
    // Predicated region
    $region2: #{tpu_custom_call.1} parent=1 // pred_check
      _
    $region3: #{tpu_custom_call.1} parent=1 // pred_check_branch
      %13 = sbr.rel (0) target = $region5
    $region4: #{tpu_custom_call.1} parent=1 // pred_region
      %s15 = ssub.s32 256, 256
      %16 = vsyncadd [#allocation3], %s15
      %s17 = sshll.u32 [#allocation2], 4
      %s18 = int_to_ptr.vmem [resolvable:$true] %s17
      %23 = dma.hbm_to_vmem [thread:$0]  %s0, 256, %s18, [#allocation3], 128, 128, 8
    $region5: #{tpu_custom_call.1} parent=1 // pred_fallthru
      _
    // Predicated region
    $region6: #{tpu_custom_call.1} parent=1 // pred_check
      _
    $region7: #{tpu_custom_call.1} parent=1 // pred_check_branch
      %25 = sbr.rel (0) target = $region9
    $region8: #{tpu_custom_call.1} parent=1 // pred_region
      %s27 = ssub.s32 128, 128
      %28 = vsyncadd [#allocation5], %s27
      %s29 = sshll.u32 [#allocation4], 4
      %s30 = int_to_ptr.vmem [resolvable:$true] %s29
      %35 = dma.hbm_to_vmem [thread:$0]  %s1, 128, %s30, [#allocation5], 64, 64, 4
    $region9: #{tpu_custom_call.1} parent=1 // pred_fallthru
      _
    // Predicated region
    $region10: #{tpu_custom_call.1} parent=1 // pred_check
      _
    $region11: #{tpu_custom_call.1} parent=1 // pred_check_branch
      %37 = sbr.rel (0) target = $region13
    $region12: #{tpu_custom_call.1} parent=1 // pred_region
      _
    $region13: #{tpu_custom_call.1} parent=1 // pred_fallthru
      _
    // Predicated region
    $region14: #{tpu_custom_call.1} parent=1 // pred_check
      _
    $region15: #{tpu_custom_call.1} parent=1 // pred_check_branch
      %39 = sbr.rel (0) target = $region17
    $region16: #{tpu_custom_call.1} parent=1 // pred_region
      %s41 = ssub.s32 256, 256
      %42 = vsyncadd [#allocation5], %s41
      %s43 = sshll.u32 [#allocation6], 4
      %s44 = int_to_ptr.vmem [resolvable:$true] %s43
      %49 = dma.hbm_to_vmem [thread:$0]  %s3, 256, %s44, [#allocation5], 64, 64, 4
    $region17: #{tpu_custom_call.1} parent=1 // pred_fallthru
      _
    // Predicated region
    $region18: #{tpu_custom_call.1} parent=1 // pred_check
      _
    $region19: #{tpu_custom_call.1} parent=1 // pred_check_branch
      %51 = sbr.rel (0) target = $region21
    $region20: #{tpu_custom_call.1} parent=1 // pred_region
      _
    $region21: #{tpu_custom_call.1} parent=1 // pred_fallthru
      _
    // Predicated region
    $region22: #{tpu_custom_call.1} parent=1 // pred_check
      _
    $region23: #{tpu_custom_call.1} parent=1 // pred_check_branch
      %53 = sbr.rel (0) target = $region25
    $region24: #{tpu_custom_call.1} parent=1 // pred_region
      %54 = dma.done [#allocation3], 256
    $region25: #{tpu_custom_call.1} parent=1 // pred_fallthru
      _
    // Predicated region
    $region26: #{tpu_custom_call.1} parent=1 // pred_check
      _
    $region27: #{tpu_custom_call.1} parent=1 // pred_check_branch
      %56 = sbr.rel (0) target = $region29
    $region28: #{tpu_custom_call.1} parent=1 // pred_region
      %57 = dma.done [#allocation5], 128
    $region29: #{tpu_custom_call.1} parent=1 // pred_fallthru
      _
    // Predicated region
    $region30: #{tpu_custom_call.1} parent=1 // pred_check
      _
    $region31: #{tpu_custom_call.1} parent=1 // pred_check_branch
      %59 = sbr.rel (0) target = $region33
    $region32: #{tpu_custom_call.1} parent=1 // pred_region
      %60 = dma.done [#allocation5], 256
    $region33: #{tpu_custom_call.1} parent=1 // pred_fallthru
      _
    %v62 = vld [vmem:[#allocation2] sm:$0xff]
    %v63 = vld [vmem:[#allocation2 + $0x8] sm:$0xff]
    %v64 = vpack.c.bf16 %v63, %v62
    %v65 = vld [vmem:[#allocation4] sm:$0xf]
    %v66 = vld [vmem:[#allocation4 + $0x4] sm:$0xf]
    %v67 = vld [vmem:[%s2] sm:$0x1]
    %v69 = vlaneseq
    %v70 = vshrl.u32 %v69, 7
    %v71 = vsub.s32 0, %v70
    %v72 = vrot.slane %v67, %v71
    %v76 = vunpack.c.l.b16 %v65
    %v77 = vunpack.c.l.b16 %v66
    %v78 = vpack.c.b16 %v77, %v76
    %vm80 = vcmask 130048
    %v82 = vsel %vm80, %v64, 0
    %84 = vmatprep.subr.bf16.mxu0 0
    %85 = vmatpush1.bf16.msra.mxu0 %v78
    %86 = vmatprep.subr.bf16.mxu0 0
    %87 = vmatpush1.bf16.msra.mxu0 0
    %88 = vmatprep.subr.bf16.mxu0 0
    %89 = vmatpush1.bf16.msra.mxu0 0
    %90 = vmatprep.subr.bf16.mxu0 0
    %91 = vmatpush1.bf16.msra.mxu0 0
    %92 = vmatprep.subr.bf16.mxu0 0
    %93 = vmatpush1.bf16.msra.mxu0 0
    %94 = vmatprep.subr.bf16.mxu0 0
    %95 = vmatpush1.bf16.msra.mxu0 0
    %96 = vmatprep.subr.bf16.mxu0 0
    %97 = vmatpush1.bf16.msra.mxu0 0
    %98 = vmatprep.subr.bf16.mxu0 0
    %99 = vmatpush1.bf16.msra.mxu0 0
    %100 = vmatprep.subr.bf16.mxu0 0
    %101 = vmatpush1.bf16.msra.mxu0 0
    %102 = vmatprep.subr.bf16.mxu0 0
    %103 = vmatpush1.bf16.msra.mxu0 0
    %104 = vmatprep.subr.bf16.mxu0 0
    %105 = vmatpush1.bf16.msra.mxu0 0
    %106 = vmatprep.subr.bf16.mxu0 0
    %107 = vmatpush1.bf16.msra.mxu0 0
    %108 = vmatprep.subr.bf16.mxu0 0
    %109 = vmatpush1.bf16.msra.mxu0 0
    %110 = vmatprep.subr.bf16.mxu0 0
    %111 = vmatpush1.bf16.msra.mxu0 0
    %112 = vmatprep.subr.bf16.mxu0 0
    %113 = vmatpush1.bf16.msra.mxu0 0
    %114 = vmatprep.subr.bf16.mxu0 0
    %115 = vmatpush1.bf16.msra.mxu0 0
    %116 = vmatprep.mubr.bf16.mxu0 0
    %117 = vmatmul.mubr.bf16.gmra.mrb[0].mxu0 %v82
    %v118 = vpop.f32.mrb[0].mxu0
    %v119 = vadd.f32 %v72, %v118
    %v120 = vpop.f32.mrb[0].mxu0
    %v121 = vpop.f32.mrb[0].mxu0
    %v122 = vadd.f32 %v72, %v121
    %v123 = vpop.f32.mrb[0].mxu0
    %124 = vdwg.mxu0
    %v125 = vmax.f32 %v119, 0.0
    %v126 = vmax.f32 %v122, 0.0
    %v127 = vpack.c.bf16 %v126, %v125
    %v128 = vld [vmem:[#allocation6] sm:$0xf]
    %v129 = vld [vmem:[#allocation6 + $0x4] sm:$0xf]
    %v130 = vld [vmem:[#allocation6 + $0x8] sm:$0xf]
    %v131 = vld [vmem:[#allocation6 + $0xc] sm:$0xf]
    %v132 = vld [vmem:[%s4] sm:$0x1]
    %v134 = vlaneseq
    %v135 = vshrl.u32 %v134, 7
    %v136 = vsub.s32 0, %v135
    %v137 = vrot.slane %v132, %v136
    %v143 = vunpack.c.l.b16 %v128
    %v144 = vunpack.c.l.b16 %v129
    %v145 = vunpack.c.l.b16 %v130
    %v146 = vunpack.c.l.b16 %v131
    %v147 = vpack.c.b16 %v144, %v143
    %v148 = vpack.c.b16 %v146, %v145
    %vm151 = vcmask 261120
    %v153 = vsel %vm151, %v127, 0
    %155 = vmatprep.subr.bf16.mxu0 0
    %156 = vmatpush1.bf16.msra.mxu0 %v147
    %157 = vmatprep.subr.bf16.mxu0 0
    %158 = vmatpush1.bf16.msra.mxu0 %v148
    %159 = vmatprep.subr.bf16.mxu0 0
    %160 = vmatpush1.bf16.msra.mxu0 0
    %161 = vmatprep.subr.bf16.mxu0 0
    %162 = vmatpush1.bf16.msra.mxu0 0
    %163 = vmatprep.subr.bf16.mxu0 0
    %164 = vmatpush1.bf16.msra.mxu0 0
    %165 = vmatprep.subr.bf16.mxu0 0
    %166 = vmatpush1.bf16.msra.mxu0 0
    %167 = vmatprep.subr.bf16.mxu0 0
    %168 = vmatpush1.bf16.msra.mxu0 0
    %169 = vmatprep.subr.bf16.mxu0 0
    %170 = vmatpush1.bf16.msra.mxu0 0
    %171 = vmatprep.subr.bf16.mxu0 0
    %172 = vmatpush1.bf16.msra.mxu0 0
    %173 = vmatprep.subr.bf16.mxu0 0
    %174 = vmatpush1.bf16.msra.mxu0 0
    %175 = vmatprep.subr.bf16.mxu0 0
    %176 = vmatpush1.bf16.msra.mxu0 0
    %177 = vmatprep.subr.bf16.mxu0 0
    %178 = vmatpush1.bf16.msra.mxu0 0
    %179 = vmatprep.subr.bf16.mxu0 0
    %180 = vmatpush1.bf16.msra.mxu0 0
    %181 = vmatprep.subr.bf16.mxu0 0
    %182 = vmatpush1.bf16.msra.mxu0 0
    %183 = vmatprep.subr.bf16.mxu0 0
    %184 = vmatpush1.bf16.msra.mxu0 0
    %185 = vmatprep.subr.bf16.mxu0 0
    %186 = vmatpush1.bf16.msra.mxu0 0
    %187 = vmatprep.mubr.bf16.mxu0 0
    %188 = vmatmul.mubr.bf16.gmra.mrb[0].mxu0 %v153
    %v189 = vpop.f32.mrb[0].mxu0
    %v190 = vadd.f32 %v137, %v189
    %v191 = vpop.f32.mrb[0].mxu0
    %v192 = vpop.f32.mrb[0].mxu0
    %v193 = vadd.f32 %v137, %v192
    %v194 = vpop.f32.mrb[0].mxu0
    %195 = vdwg.mxu0
    %196 = vmax.xlane.f32.xlu0 %v190
    %v197 = vpop.xlane.xlu0 %196
    %198 = vmax.xlane.f32.xlu0 %v193
    %v199 = vpop.xlane.xlu0 %198
    %v200 = vsub.f32 %v190, %v197
    %v201 = vsub.f32 %v193, %v199
    %v202 = vmul.f32 %v200, 1.442695
    %v203 = vpow.pop %v202
    %v204 = vmul.f32 %v201, 1.442695
    %v205 = vpow.pop %v204
    %206 = vadd.xlane.f32.xlu0 %v203
    %v207 = vpop.xlane.xlu0 %206
    %208 = vadd.xlane.f32.xlu0 %v205
    %v209 = vpop.xlane.xlu0 %208
    %v210 = vrcp.pop %v207
    %v211 = vmul.f32 %v203, %v210
    %v212 = vrcp.pop %v209
    %v213 = vmul.f32 %v205, %v212
    %vm214 = vcmask 31744
    %215 = vst.msk [vmem:[%s5] sm:$0xff] %vm214, %v211
    %216 = vst.msk [vmem:[%s5 + $0x8] sm:$0xff] %vm214, %v213
    // Predicated region
    $region34: #{tpu_custom_call.1} parent=1 // pred_check
      _
    $region35: #{tpu_custom_call.1} parent=1 // pred_check_branch
      %218 = sbr.rel (0) target = $region37
    $region36: #{tpu_custom_call.1} parent=1 // pred_region
      _
    $region37: #{tpu_custom_call.1} parent=1 // pred_fallthru
      _
    // Predicated region
    $region38: #{tpu_custom_call.1} parent=1 // pred_check
      _
    $region39: #{tpu_custom_call.1} parent=1 // pred_check_branch
      %220 = sbr.rel (0) target = $region41
    $region40: #{tpu_custom_call.1} parent=1 // pred_region
      _
    $region41: #{tpu_custom_call.1} parent=1 // pred_fallthru
      _
    %221 = vsyncpa [#allocation3], 1
    %222 = vsyncpa [#allocation5], 1

</llo_original>
